<compile_context>
chip_gen: v7x
topology: tpu7x:2x2x1
jax: 0.10.0
libtpu: 0.0.40
codegen_flags: <defaults>
</compile_context>

<pallas_src>
import functools

import numpy as np

import jax
import jax.numpy as jnp
from jax.experimental import pallas as pl
from jax.experimental.pallas import tpu as pltpu


def _round_up(n, m):
    return (n + m - 1) // m * m


def _dqn_kernel(x_ref, w1_ref, w2_ref, w3_ref, b_ref, o_ref, *, hidden, out_dim):
    b = b_ref[...]  # (3, W) f32, packed biases
    # fc1 + ReLU (bias/ReLU in f32; cast only right before the next MXU op)
    h1 = jnp.dot(x_ref[...], w1_ref[...], preferred_element_type=jnp.float32)
    h1 = jnp.maximum(h1 + b[0:1, :hidden], 0.0).astype(w2_ref.dtype)
    # fc2 + ReLU
    h2 = jnp.dot(h1, w2_ref[...], preferred_element_type=jnp.float32)
    h2 = jnp.maximum(h2 + b[1:2, :hidden], 0.0).astype(w3_ref.dtype)
    # fc3 (no activation)
    out = jnp.dot(h2, w3_ref[...], preferred_element_type=jnp.float32)
    o_ref[...] = (out + b[2:3, :out_dim]).astype(o_ref.dtype)


def pack_dqn_params(params, *, compute_dtype=jnp.bfloat16):
    """One-time parameter prep (hoisted out of the per-call path).

    Casts weights to the compute dtype and packs the three bias vectors into a
    single (3, W) f32 slab (fewer DMA descriptors per call).
    """
    w1, b1, w2, b2, w3, b3 = params
    hidden = w1.shape[1]
    action_dim = w3.shape[1]
    bw = max(hidden, action_dim)

    bias = jnp.zeros((3, bw), jnp.float32)
    bias = bias.at[0, :hidden].set(b1.reshape(-1).astype(jnp.float32))
    bias = bias.at[1, :hidden].set(b2.reshape(-1).astype(jnp.float32))
    bias = bias.at[2, :action_dim].set(b3.reshape(-1).astype(jnp.float32))

    return (
        w1.astype(compute_dtype),
        w2.astype(compute_dtype),
        w3.astype(compute_dtype),
        bias,
    )


def dqn_forward(x, packed, *, block_batch=512, out_dtype=jnp.float32):
    """Fused DQN forward.

    `packed` comes from pack_dqn_params (weights stored as (in, out)).
    Returns (batch, action_dim) directly — no padded slab, no post-slice.
    """
    w1c, w2c, w3c, bias = packed
    batch, state_dim = x.shape
    hidden = w1c.shape[1]
    action_dim = w3c.shape[1]
    cdt = w1c.dtype

    # ---- batch tile selection ------------------------------------------------
    # Big tiles amortize per-grid-step overhead; cap at ~batch/2 for large
    # batches so the "parallel" grid has >=2 steps (v7x megacore).
    tb = min(block_batch, batch)
    if batch >= 512:
        tb = min(tb, _round_up(batch // 2, 8))
    grid = pl.cdiv(batch, tb)

    xp = x.astype(cdt)

    kernel = functools.partial(_dqn_kernel, hidden=hidden, out_dim=action_dim)

    def resident(shape):
        # Full-extent block with a constant index_map -> stays in VMEM for the
        # whole grid (loaded once, no re-DMA per batch tile).
        return pl.BlockSpec(shape, lambda i: (0, 0))

    flops = 2 * batch * (state_dim * hidden + hidden * hidden + hidden * action_dim)
    bytes_accessed = (
        xp.size * xp.dtype.itemsize
        + w1c.size * w1c.dtype.itemsize
        + w2c.size * w2c.dtype.itemsize
        + w3c.size * w3c.dtype.itemsize
        + bias.size * bias.dtype.itemsize
        + batch * action_dim * np.dtype(out_dtype).itemsize
    )

    out = pl.pallas_call(
        kernel,
        out_shape=jax.ShapeDtypeStruct((batch, action_dim), out_dtype),
        grid_spec=pl.GridSpec(
            grid=(grid,),
            in_specs=[
                pl.BlockSpec((tb, state_dim), lambda i: (i, 0)),  # x tile (streams)
                resident(w1c.shape),
                resident(w2c.shape),
                resident(w3c.shape),
                resident(bias.shape),
            ],
            # Last dim == full action_dim (narrow, masked stores) — far fewer
            # HBM write bytes than a 128-lane zero-padded slab for this
            # HBM-bound kernel.
            out_specs=pl.BlockSpec((tb, action_dim), lambda i: (i, 0)),
        ),
        compiler_params=pltpu.CompilerParams(
            dimension_semantics=("parallel",),
        ),
        cost_estimate=pl.CostEstimate(
            flops=flops, transcendentals=0, bytes_accessed=bytes_accessed
        ),
    )(xp, w1c, w2c, w3c, bias)

    return out


def init_params(key, state_dim, action_dim, hidden_dim=128):
    # Deterministic init mimicking nn.Linear's U(-1/sqrt(fan_in), 1/sqrt(fan_in)).
    # Weights stored as (in, out) so the kernel does x @ W + b.
    ks = jax.random.split(key, 6)

    def linear(kw, kb, fan_in, fan_out):
        bound = 1.0 / jnp.sqrt(jnp.float32(fan_in))
        w = jax.random.uniform(kw, (fan_in, fan_out), jnp.float32, -bound, bound)
        b = jax.random.uniform(kb, (1, fan_out), jnp.float32, -bound, bound)
        return w, b

    w1, b1 = linear(ks[0], ks[1], state_dim, hidden_dim)
    w2, b2 = linear(ks[2], ks[3], hidden_dim, hidden_dim)
    w3, b3 = linear(ks[4], ks[5], hidden_dim, action_dim)
    return (w1, b1, w2, b2, w3, b3)


def dqn_reference(x, params):
    w1, b1, w2, b2, w3, b3 = params
    h1 = jnp.maximum(x @ w1 + b1, 0.0)
    h2 = jnp.maximum(h1 @ w2 + b2, 0.0)
    return h2 @ w3 + b3


if __name__ == "__main__":
    key = jax.random.PRNGKey(0)
    k_x, k_p = jax.random.split(key)

    # Small but multi-tile-capable shapes consistent with the DQN module.
    batch, state_dim, action_dim, hidden_dim = 200, 16, 8, 128
    x = jax.random.normal(k_x, (batch, state_dim), jnp.float32)
    params = init_params(k_p, state_dim, action_dim, hidden_dim)

    ref = dqn_reference(x, params)

    # f32 compute path with a small tile (2 grid steps + ragged last block)
    # — must match the JAX reference tightly.
    packed_f32 = pack_dqn_params(params, compute_dtype=jnp.float32)
    fwd_f32 = jax.jit(functools.partial(dqn_forward, block_batch=128))
    out = jax.block_until_ready(fwd_f32(x, packed_f32))
    assert out.shape == (batch, action_dim)
    assert jnp.allclose(out, ref, atol=1e-5, rtol=1e-5), "f32 mismatch vs reference"

    # Default path: bf16 compute (native MXU on v5e/v6e/v7x), f32 accumulation,
    # params packed once and reused — loose tolerance check.
    packed = pack_dqn_params(params)  # bf16 by default
    fwd = jax.jit(functools.partial(dqn_forward, block_batch=512))
    out_bf16 = jax.block_until_ready(fwd(x, packed))
    assert out_bf16.shape == (batch, action_dim)
    assert float(jnp.max(jnp.abs(out_bf16 - ref))) < 0.25, "bf16 mismatch vs reference"

    print("KERNEL_OK")
</pallas_src>

<mosaic_0001>
module attributes {stable_mosaic.version = 11 : i64} {
  func.func @_dqn_kernel(%arg0: i32, %arg1: memref<128x16xf32, #tpu.memory_space<vmem>>, %arg2: memref<16x128xf32, #tpu.memory_space<vmem>>, %arg3: memref<128x128xf32, #tpu.memory_space<vmem>>, %arg4: memref<128x8xf32, #tpu.memory_space<vmem>>, %arg5: memref<3x128xf32, #tpu.memory_space<vmem>>, %arg6: memref<128x8xf32, #tpu.memory_space<vmem>>) attributes {dimension_semantics = [#tpu.dimension_semantics<parallel>], iteration_bounds = array<i64: 2>, scalar_prefetch = 0 : i64, scratch_operands = 0 : i64, tpu.core_type = #tpu.core_type<tc>, window_params = [{transform_indices = @transform_0, window_bounds = array<i64: 128, 16>}, {pipeline_mode = #tpu.pipeline_mode<synchronous>, transform_indices = @transform_1, window_bounds = array<i64: 16, 128>}, {pipeline_mode = #tpu.pipeline_mode<synchronous>, transform_indices = @transform_2, window_bounds = array<i64: 128, 128>}, {pipeline_mode = #tpu.pipeline_mode<synchronous>, transform_indices = @transform_3, window_bounds = array<i64: 128, 8>}, {pipeline_mode = #tpu.pipeline_mode<synchronous>, transform_indices = @transform_4, window_bounds = array<i64: 3, 128>}, {transform_indices = @transform_5, window_bounds = array<i64: 128, 8>}]} {
    %c0 = arith.constant 0 : index
    %c0_0 = arith.constant 0 : index
    %0 = vector.load %arg5[%c0, %c0_0] : memref<3x128xf32, #tpu.memory_space<vmem>>, vector<3x128xf32>
    %c0_1 = arith.constant 0 : index
    %c0_2 = arith.constant 0 : index
    %1 = vector.load %arg1[%c0_1, %c0_2] : memref<128x16xf32, #tpu.memory_space<vmem>>, vector<128x16xf32>
    %c0_3 = arith.constant 0 : index
    %c0_4 = arith.constant 0 : index
    %2 = vector.load %arg2[%c0_3, %c0_4] : memref<16x128xf32, #tpu.memory_space<vmem>>, vector<16x128xf32>
    %cst = arith.constant dense<0.000000e+00> : vector<128x128xf32>
    %3 = tpu.matmul %1, %2, %cst {dimension_numbers = #tpu.dot_dimension_numbers<[1], [0], [0], [1], [0, 0, 1, 1], [], []>} : vector<128x16xf32>, vector<16x128xf32>, vector<128x128xf32> -> vector<128x128xf32>
    %4 = vector.extract_strided_slice %0 {offsets = [0, 0], sizes = [1, 128], strides = [1, 1]} : vector<3x128xf32> to vector<1x128xf32>
    %5 = vector.broadcast %4 : vector<1x128xf32> to vector<128x128xf32>
    %6 = arith.addf %3, %5 : vector<128x128xf32>
    %cst_5 = arith.constant 0.000000e+00 : f32
    %7 = vector.broadcast %cst_5 : f32 to vector<128x128xf32>
    %8 = arith.maximumf %6, %7 : vector<128x128xf32>
    %c0_6 = arith.constant 0 : index
    %c0_7 = arith.constant 0 : index
    %9 = vector.load %arg3[%c0_6, %c0_7] : memref<128x128xf32, #tpu.memory_space<vmem>>, vector<128x128xf32>
    %cst_8 = arith.constant dense<0.000000e+00> : vector<128x128xf32>
    %10 = tpu.matmul %8, %9, %cst_8 {dimension_numbers = #tpu.dot_dimension_numbers<[1], [0], [0], [1], [0, 0, 1, 1], [], []>} : vector<128x128xf32>, vector<128x128xf32>, vector<128x128xf32> -> vector<128x128xf32>
    %11 = vector.extract_strided_slice %0 {offsets = [1, 0], sizes = [1, 128], strides = [1, 1]} : vector<3x128xf32> to vector<1x128xf32>
    %12 = vector.broadcast %11 : vector<1x128xf32> to vector<128x128xf32>
    %13 = arith.addf %10, %12 : vector<128x128xf32>
    %cst_9 = arith.constant 0.000000e+00 : f32
    %14 = vector.broadcast %cst_9 : f32 to vector<128x128xf32>
    %15 = arith.maximumf %13, %14 : vector<128x128xf32>
    %c0_10 = arith.constant 0 : index
    %c0_11 = arith.constant 0 : index
    %16 = vector.load %arg4[%c0_10, %c0_11] : memref<128x8xf32, #tpu.memory_space<vmem>>, vector<128x8xf32>
    %cst_12 = arith.constant dense<0.000000e+00> : vector<128x8xf32>
    %17 = tpu.matmul %15, %16, %cst_12 {dimension_numbers = #tpu.dot_dimension_numbers<[1], [0], [0], [1], [0, 0, 1, 1], [], []>} : vector<128x128xf32>, vector<128x8xf32>, vector<128x8xf32> -> vector<128x8xf32>
    %18 = vector.extract_strided_slice %0 {offsets = [2, 0], sizes = [1, 8], strides = [1, 1]} : vector<3x128xf32> to vector<1x8xf32>
    %19 = vector.broadcast %18 : vector<1x8xf32> to vector<128x8xf32>
    %20 = arith.addf %17, %19 : vector<128x8xf32>
    %c0_13 = arith.constant 0 : index
    %c0_14 = arith.constant 0 : index
    %21 = vector.load %arg6[%c0_13, %c0_14] : memref<128x8xf32, #tpu.memory_space<vmem>>, vector<128x8xf32>
    tpu.vector_store %arg6[%c0_13, %c0_14], %20 {strides = array<i32>} : memref<128x8xf32, #tpu.memory_space<vmem>>, vector<128x8xf32>,
    return
  }
  func.func @transform_0(%arg0: i32) -> (i32, i32) {
    %c0_i32 = arith.constant 0 : i32
    %c0_i32_0 = arith.constant 0 : i32
    return %arg0, %c0_i32 : i32, i32
  }
  func.func @transform_1(%arg0: i32) -> (i32, i32) {
    %c0_i32 = arith.constant 0 : i32
    %c0_i32_0 = arith.constant 0 : i32
    %c0_i32_1 = arith.constant 0 : i32
    return %c0_i32, %c0_i32_0 : i32, i32
  }
  func.func @transform_2(%arg0: i32) -> (i32, i32) {
    %c0_i32 = arith.constant 0 : i32
    %c0_i32_0 = arith.constant 0 : i32
    %c0_i32_1 = arith.constant 0 : i32
    return %c0_i32, %c0_i32_0 : i32, i32
  }
  func.func @transform_3(%arg0: i32) -> (i32, i32) {
    %c0_i32 = arith.constant 0 : i32
    %c0_i32_0 = arith.constant 0 : i32
    %c0_i32_1 = arith.constant 0 : i32
    return %c0_i32, %c0_i32_0 : i32, i32
  }
  func.func @transform_4(%arg0: i32) -> (i32, i32) {
    %c0_i32 = arith.constant 0 : i32
    %c0_i32_0 = arith.constant 0 : i32
    %c0_i32_1 = arith.constant 0 : i32
    return %c0_i32, %c0_i32_0 : i32, i32
  }
  func.func @transform_5(%arg0: i32) -> (i32, i32) {
    %c0_i32 = arith.constant 0 : i32
    %c0_i32_0 = arith.constant 0 : i32
    return %arg0, %c0_i32 : i32, i32
  }
}

</mosaic_0001>

<llo_original>
// kernel: dqn_forward.1
$region0: #{dqn_forward.1}
  #allocation0 [shape = 'u32[]', space=smem, size = 0x4, offset = 0x4, fixed_abs, tag = 'smem constant byte address 0x4 - core index']
  #allocation1 [shape = 'u32[144,128]{1,0:T(1,128)}', space=vmem, size = 0x12000, scoped, tag = 'internal scratch']
  %s0 = inlined_call_operand.vmem [shape: f32[200,16], index: 0, kind: input, shape index: {}]
  %s1 = inlined_call_operand.vmem [shape: f32[16,128], index: 1, kind: input, shape index: {}]
  %s2 = inlined_call_operand.vmem [shape: f32[128,128], index: 2, kind: input, shape index: {}]
  %s3 = inlined_call_operand.vmem [shape: f32[128,8], index: 3, kind: input, shape index: {}]
  %s4 = inlined_call_operand.vmem [shape: f32[3,128], index: 4, kind: input, shape index: {}]
  %s5 = inlined_call_operand.vmem [shape: f32[200,8], index: 5, kind: output, shape index: {}]
  %s6 = sld [smem:[#allocation0]]
  $region101: #{dqn_forward.1} parent=0
    _
  %s8 = ssub.s32 1, %s6
  %s9 = scalar_select 0, %s8, %s6
  $region1: #{dqn_forward.1} parent=0
    #allocation2 [shape = 'u8[131072]{0}', space=vmem, size = 0x20000, scoped, tag = 'output window, operand 0']
    loop: start=0, step=1, limit=4
    $region2: #{dqn_forward.1} parent=1 // loop_pre_header
      _
    $region3: #{dqn_forward.1} parent=1 // loop_header
      %s11 = sphi 0, %s15
      %p12 = scmp.ge.s32.totalorder %s11, 4
      %s21 = sphi 0, %s23
      %s24 = sphi 0, %s21
      %s25 = sphi 0, %s24
      %s41 = sphi 0, %s25
      %s45 = sphi 0, %s45
      %s47 = sphi 0, %s45
      %s48 = sphi 0, %s47
      %s62 = sphi 0, %s48
      %s66 = sphi 0, %s66
      %s68 = sphi 0, %s66
      %s69 = sphi 0, %s68
      %s83 = sphi 0, %s69
      %s87 = sphi 0, %s87
      %s89 = sphi 0, %s87
      %s90 = sphi 0, %s89
      %s104 = sphi 0, %s90
      %s108 = sphi 0, %s108
      %s110 = sphi 0, %s108
      %s111 = sphi 0, %s110
      %s125 = sphi 0, %s111
      %s131 = sphi 0, %s133
      %s134 = sphi 0, %s131
      %s135 = sphi 0, %s134
      %s151 = sphi 0, %s135
    $region4: #{dqn_forward.1} parent=1 // loop_header_branch
      %14 = sbr.rel (%p12) target = $region8
    $region5: #{dqn_forward.1} parent=1 // loop_body
      %s16 = ssub.s32 %s11, 1
      %s17 = ssub.s32 %s11, 2
      %s18 = sadd.s32 %s11, 1
      %s19 = ssub.s32 %s11, %s18
      %p20 = scmp.eq.s32.totalorder %s19, 0
      %s22 = sadd.s32 %s21, 1
      %s23 = scalar_select %p20, %s21, %s22
      %p26 = pneg %p20
      %p27 = scmp.eq.s32.totalorder %s11, 1
      %p28 = por %p26, %p27
      %p29 = scmp.ne.s32.totalorder %s21, %s24
      %p30 = scmp.eq.s32.totalorder %s11, 0
      %p31 = por %p29, %p30
      %p32 = scmp.ne.s32.totalorder %s21, %s24
      %p33 = scmp.eq.s32.totalorder %s16, 1
      %p34 = por %p32, %p33
      %p35 = scmp.ne.s32.totalorder %s24, %s25
      %p36 = scmp.eq.s32.totalorder %s16, 0
      %p37 = por %p35, %p36
      %p38 = scmp.ne.s32.totalorder %s24, %s25
      %p39 = scmp.eq.s32.totalorder %s17, 1
      %p40 = por %p38, %p39
      %p42 = scmp.ne.s32.totalorder %s25, %s41
      %p43 = scmp.eq.s32.totalorder %s17, 0
      %p44 = por %p42, %p43
      %s46 = sadd.s32 %s45, 1
      %p49 = scmp.eq.s32.totalorder %s11, 1
      %p50 = scmp.ne.s32.totalorder %s45, %s47
      %p51 = scmp.eq.s32.totalorder %s11, 0
      %p52 = por %p50, %p51
      %p53 = scmp.ne.s32.totalorder %s45, %s47
      %p54 = scmp.eq.s32.totalorder %s16, 1
      %p55 = por %p53, %p54
      %p56 = scmp.ne.s32.totalorder %s47, %s48
      %p57 = scmp.eq.s32.totalorder %s16, 0
      %p58 = por %p56, %p57
      %p59 = scmp.ne.s32.totalorder %s47, %s48
      %p60 = scmp.eq.s32.totalorder %s17, 1
      %p61 = por %p59, %p60
      %p63 = scmp.ne.s32.totalorder %s48, %s62
      %p64 = scmp.eq.s32.totalorder %s17, 0
      %p65 = por %p63, %p64
      %s67 = sadd.s32 %s66, 1
      %p70 = scmp.eq.s32.totalorder %s11, 1
      %p71 = scmp.ne.s32.totalorder %s66, %s68
      %p72 = scmp.eq.s32.totalorder %s11, 0
      %p73 = por %p71, %p72
      %p74 = scmp.ne.s32.totalorder %s66, %s68
      %p75 = scmp.eq.s32.totalorder %s16, 1
      %p76 = por %p74, %p75
      %p77 = scmp.ne.s32.totalorder %s68, %s69
      %p78 = scmp.eq.s32.totalorder %s16, 0
      %p79 = por %p77, %p78
      %p80 = scmp.ne.s32.totalorder %s68, %s69
      %p81 = scmp.eq.s32.totalorder %s17, 1
      %p82 = por %p80, %p81
      %p84 = scmp.ne.s32.totalorder %s69, %s83
      %p85 = scmp.eq.s32.totalorder %s17, 0
      %p86 = por %p84, %p85
      %s88 = sadd.s32 %s87, 1
      %p91 = scmp.eq.s32.totalorder %s11, 1
      %p92 = scmp.ne.s32.totalorder %s87, %s89
      %p93 = scmp.eq.s32.totalorder %s11, 0
      %p94 = por %p92, %p93
      %p95 = scmp.ne.s32.totalorder %s87, %s89
      %p96 = scmp.eq.s32.totalorder %s16, 1
      %p97 = por %p95, %p96
      %p98 = scmp.ne.s32.totalorder %s89, %s90
      %p99 = scmp.eq.s32.totalorder %s16, 0
      %p100 = por %p98, %p99
      %p101 = scmp.ne.s32.totalorder %s89, %s90
      %p102 = scmp.eq.s32.totalorder %s17, 1
      %p103 = por %p101, %p102
      %p105 = scmp.ne.s32.totalorder %s90, %s104
      %p106 = scmp.eq.s32.totalorder %s17, 0
      %p107 = por %p105, %p106
      %s109 = sadd.s32 %s108, 1
      %p112 = scmp.eq.s32.totalorder %s11, 1
      %p113 = scmp.ne.s32.totalorder %s108, %s110
      %p114 = scmp.eq.s32.totalorder %s11, 0
      %p115 = por %p113, %p114
      %p116 = scmp.ne.s32.totalorder %s108, %s110
      %p117 = scmp.eq.s32.totalorder %s16, 1
      %p118 = por %p116, %p117
      %p119 = scmp.ne.s32.totalorder %s110, %s111
      %p120 = scmp.eq.s32.totalorder %s16, 0
      %p121 = por %p119, %p120
      %p122 = scmp.ne.s32.totalorder %s110, %s111
      %p123 = scmp.eq.s32.totalorder %s17, 1
      %p124 = por %p122, %p123
      %p126 = scmp.ne.s32.totalorder %s111, %s125
      %p127 = scmp.eq.s32.totalorder %s17, 0
      %p128 = por %p126, %p127
      %s129 = ssub.s32 %s11, %s18
      %p130 = scmp.eq.s32.totalorder %s129, 0
      %s132 = sadd.s32 %s131, 1
      %s133 = scalar_select %p130, %s131, %s132
      %p136 = pneg %p130
      %p137 = scmp.eq.s32.totalorder %s11, 1
      %p138 = por %p136, %p137
      %p139 = scmp.ne.s32.totalorder %s131, %s134
      %p140 = scmp.eq.s32.totalorder %s11, 0
      %p141 = por %p139, %p140
      %p142 = scmp.ne.s32.totalorder %s131, %s134
      %p143 = scmp.eq.s32.totalorder %s16, 1
      %p144 = por %p142, %p143
      %p145 = scmp.ne.s32.totalorder %s134, %s135
      %p146 = scmp.eq.s32.totalorder %s16, 0
      %p147 = por %p145, %p146
      %p148 = scmp.ne.s32.totalorder %s134, %s135
      %p149 = scmp.eq.s32.totalorder %s17, 1
      %p150 = por %p148, %p149
      %p152 = scmp.ne.s32.totalorder %s135, %s151
      %p153 = scmp.eq.s32.totalorder %s17, 0
      %p154 = por %p152, %p153
      %p155 = scmp.le.s32.totalorder 1, %s11
      %p156 = scmp.lt.s32.totalorder %s11, 3
      %p157 = pnand %p155, %p156
      %p158 = pneg %p157
      // Predicated region
      $region9: #{dqn_forward.1} parent=5 // pred_check
        _
      $region10: #{dqn_forward.1} parent=5 // pred_check_branch
        %160 = sbr.rel (%p157) target = $region12
      $region11: #{dqn_forward.1} parent=5 // pred_region
        %s161 = ssub.s32 %s11, 1
        // Predicated region
        $region13: #{dqn_forward.1} parent=11 // pred_check
          %p162 = pneg %p58
        $region14: #{dqn_forward.1} parent=11 // pred_check_branch
          %164 = sbr.rel (%p162) target = $region16
        $region15: #{dqn_forward.1} parent=11 // pred_region
          _
        $region16: #{dqn_forward.1} parent=11 // pred_fallthru
          _
        // Predicated region
        $region17: #{dqn_forward.1} parent=11 // pred_check
          %p165 = pneg %p79
        $region18: #{dqn_forward.1} parent=11 // pred_check_branch
          %167 = sbr.rel (%p165) target = $region20
        $region19: #{dqn_forward.1} parent=11 // pred_region
          _
        $region20: #{dqn_forward.1} parent=11 // pred_fallthru
          _
        // Predicated region
        $region21: #{dqn_forward.1} parent=11 // pred_check
          %p168 = pneg %p100
        $region22: #{dqn_forward.1} parent=11 // pred_check_branch
          %170 = sbr.rel (%p168) target = $region24
        $region23: #{dqn_forward.1} parent=11 // pred_region
          _
        $region24: #{dqn_forward.1} parent=11 // pred_fallthru
          _
        // Predicated region
        $region25: #{dqn_forward.1} parent=11 // pred_check
          %p171 = pneg %p121
        $region26: #{dqn_forward.1} parent=11 // pred_check_branch
          %173 = sbr.rel (%p171) target = $region28
        $region27: #{dqn_forward.1} parent=11 // pred_region
          _
        $region28: #{dqn_forward.1} parent=11 // pred_fallthru
          _
      $region12: #{dqn_forward.1} parent=5 // pred_fallthru
        _
      %p174 = scmp.lt.s32.totalorder %s11, 2
      // Predicated region
      $region29: #{dqn_forward.1} parent=5 // pred_check
        %p175 = pneg %p174
      $region30: #{dqn_forward.1} parent=5 // pred_check_branch
        %177 = sbr.rel (%p175) target = $region32
      $region31: #{dqn_forward.1} parent=5 // pred_region
        // Predicated region
        $region33: #{dqn_forward.1} parent=31 // pred_check
          %p178 = pneg %p31
        $region34: #{dqn_forward.1} parent=31 // pred_check_branch
          %180 = sbr.rel (%p178) target = $region36
        $region35: #{dqn_forward.1} parent=31 // pred_region
          %s181 = smul.u32 16, %s11
          %s182 = ssub.s32 25, %s181
          %p183 = scmp.lt.s32.totalorder %s182, 16
          %s184 = scalar_select %p183, %s182, 16
          %s185 = smul.u32 128, %s184
          %p186 = scmp.lt.s32.totalorder %s181, 24
          %s187 = scalar_select %p186, %s181, 24
          %s188 = smul.addr %s187, 8
          %s189 = scalar_lea.vmem %s0, %s188
          %s190 = smul.u32 16, %s11
          %s191 = ssub.s32 25, %s190
          %p192 = scmp.lt.s32.totalorder %s191, 16
          %s193 = scalar_select %p192, %s191, 16
          %s194 = smul.u32 128, %s193
        $region36: #{dqn_forward.1} parent=31 // pred_fallthru
          _
      $region32: #{dqn_forward.1} parent=5 // pred_fallthru
        _
      %p195 = scmp.le.s32.totalorder 1, %s11
      %p196 = scmp.lt.s32.totalorder %s11, 3
      %p197 = pnand %p195, %p196
      %p198 = pneg %p197
      // Predicated region
      $region37: #{dqn_forward.1} parent=5 // pred_check
        _
      $region38: #{dqn_forward.1} parent=5 // pred_check_branch
        %200 = sbr.rel (%p197) target = $region40
      $region39: #{dqn_forward.1} parent=5 // pred_region
        %s201 = ssub.s32 %s11, 1
        %s202 = smul.u32 16, %s16
        %s203 = ssub.s32 25, %s202
        %p204 = scmp.lt.s32.totalorder %s203, 16
        %s205 = scalar_select %p204, %s203, 16
        %s206 = smul.u32 128, %s205
        %p207 = scmp.lt.s32.totalorder %s202, 24
        %s208 = scalar_select %p207, %s202, 24
        %s209 = smul.addr %s208, 8
        %s210 = scalar_lea.vmem %s0, %s209
        %p211 = pneg %p37
        %p212 = pneg %p34
        %p213 = pneg %p58
        %p214 = pneg %p55
        %p215 = pneg %p79
        %p216 = pneg %p76
        %p217 = pneg %p100
        %p218 = pneg %p97
        %p219 = pneg %p121
        %p220 = pneg %p118
        %p221 = pneg %p147
        %p222 = pneg %p144
        %s223 = sand.u32 %s134, 1
        %s224 = sand.u32 %s134, 1
        %s225 = smul.addr %s224, 128
        %s226 = scalar_lea.vmem [#allocation2], %s225
        %s227 = smul.u32 16, %s16
        %s228 = ssub.s32 25, %s227
        %p229 = scmp.lt.s32.totalorder %s228, 16
        %s230 = scalar_select %p229, %s228, 16
        %s231 = smul.u32 128, %s230
        %p232 = scmp.lt.s32.totalorder %s227, 24
        %s233 = scalar_select %p232, %s227, 24
        %s234 = smul.addr %s233, 8
        %s235 = scalar_lea.vmem %s0, %s234
        %s236 = smul.u32 16, %s16
        %s237 = ssub.s32 25, %s236
        %p238 = scmp.lt.s32.totalorder %s237, 16
        %s239 = scalar_select %p238, %s237, 16
        %s240 = smul.u32 128, %s239
        %s241 = smul.u32 16, %s16
        %s242 = ssub.s32 25, %s241
        %p243 = scmp.lt.s32.totalorder %s242, 16
        %s244 = scalar_select %p243, %s242, 16
        %s245 = smul.u32 128, %s244
        %v246 = vld [vmem:[%s4] sm:$0x7]
        %v247 = vld [vmem:[%s235] sm:$0xff]
        %v248 = vld [vmem:[%s235 + $0x8] sm:$0xff]
        %v249 = vld [vmem:[%s235 + $0x10] sm:$0xff]
        %v250 = vld [vmem:[%s235 + $0x18] sm:$0xff]
        %v251 = vld [vmem:[%s235 + $0x20] sm:$0xff]
        %v252 = vld [vmem:[%s235 + $0x28] sm:$0xff]
        %v253 = vld [vmem:[%s235 + $0x30] sm:$0xff]
        %v254 = vld [vmem:[%s235 + $0x38] sm:$0xff]
        %v255 = vld [vmem:[%s235 + $0x40] sm:$0xff]
        %v256 = vld [vmem:[%s235 + $0x48] sm:$0xff]
        %v257 = vld [vmem:[%s235 + $0x50] sm:$0xff]
        %v258 = vld [vmem:[%s235 + $0x58] sm:$0xff]
        %v259 = vld [vmem:[%s235 + $0x60] sm:$0xff]
        %v260 = vld [vmem:[%s235 + $0x68] sm:$0xff]
        %v261 = vld [vmem:[%s235 + $0x70] sm:$0xff]
        %v262 = vld [vmem:[%s235 + $0x78] sm:$0xff]
        %v263 = vld [vmem:[%s1] sm:$0xff]
        %v264 = vld [vmem:[%s1 + $0x8] sm:$0xff]
        %v265 = vlaneseq
        %v266 = vshrl.u32 %v265, 7
        %v267 = vsub.s32 0, %v266
        %v268 = vrot.slane %v246, %v267
        %vm269 = vcmask 130048
        %v271 = vsel %vm269, %v247, 0
        %v274 = vsel %vm269, %v248, 0
        %v277 = vsel %vm269, %v249, 0
        %v280 = vsel %vm269, %v250, 0
        %v283 = vsel %vm269, %v251, 0
        %v286 = vsel %vm269, %v252, 0
        %v289 = vsel %vm269, %v253, 0
        %v292 = vsel %vm269, %v254, 0
        %v295 = vsel %vm269, %v255, 0
        %v298 = vsel %vm269, %v256, 0
        %v301 = vsel %vm269, %v257, 0
        %v304 = vsel %vm269, %v258, 0
        %v307 = vsel %vm269, %v259, 0
        %v310 = vsel %vm269, %v260, 0
        %v313 = vsel %vm269, %v261, 0
        %v316 = vsel %vm269, %v262, 0
        %318 = vmatprep.subr.mxu0 0.0
        %319 = vmatpush1.msra.mxu0 %v263
        %320 = vmatprep.subr.mxu0 0.0
        %321 = vmatpush1.msra.mxu0 %v264
        %322 = vmatprep.subr.mxu0 0.0
        %323 = vmatpush1.msra.mxu0 0.0
        %324 = vmatprep.subr.mxu0 0.0
        %325 = vmatpush1.msra.mxu0 0.0
        %326 = vmatprep.subr.mxu0 0.0
        %327 = vmatpush1.msra.mxu0 0.0
        %328 = vmatprep.subr.mxu0 0.0
        %329 = vmatpush1.msra.mxu0 0.0
        %330 = vmatprep.subr.mxu0 0.0
        %331 = vmatpush1.msra.mxu0 0.0
        %332 = vmatprep.subr.mxu0 0.0
        %333 = vmatpush1.msra.mxu0 0.0
        %334 = vmatprep.subr.mxu0 0.0
        %335 = vmatpush1.msra.mxu0 0.0
        %336 = vmatprep.subr.mxu0 0.0
        %337 = vmatpush1.msra.mxu0 0.0
        %338 = vmatprep.subr.mxu0 0.0
        %339 = vmatpush1.msra.mxu0 0.0
        %340 = vmatprep.subr.mxu0 0.0
        %341 = vmatpush1.msra.mxu0 0.0
        %342 = vmatprep.subr.mxu0 0.0
        %343 = vmatpush1.msra.mxu0 0.0
        %344 = vmatprep.subr.mxu0 0.0
        %345 = vmatpush1.msra.mxu0 0.0
        %346 = vmatprep.subr.mxu0 0.0
        %347 = vmatpush1.msra.mxu0 0.0
        %348 = vmatprep.subr.mxu0 0.0
        %349 = vmatpush1.msra.mxu0 0.0
        %350 = vmatprep.subr.mxu0 0.0
        %351 = vmatpush1.msra.mxu0 0.0
        %352 = vmatprep.subr.mxu0 0.0
        %353 = vmatpush1.msra.mxu0 0.0
        %354 = vmatprep.subr.mxu0 0.0
        %355 = vmatpush1.msra.mxu0 0.0
        %356 = vmatprep.subr.mxu0 0.0
        %357 = vmatpush1.msra.mxu0 0.0
        %358 = vmatprep.subr.mxu0 0.0
        %359 = vmatpush1.msra.mxu0 0.0
        %360 = vmatprep.subr.mxu0 0.0
        %361 = vmatpush1.msra.mxu0 0.0
        %362 = vmatprep.subr.mxu0 0.0
        %363 = vmatpush1.msra.mxu0 0.0
        %364 = vmatprep.subr.mxu0 0.0
        %365 = vmatpush1.msra.mxu0 0.0
        %366 = vmatprep.subr.mxu0 0.0
        %367 = vmatpush1.msra.mxu0 0.0
        %368 = vmatprep.subr.mxu0 0.0
        %369 = vmatpush1.msra.mxu0 0.0
        %370 = vmatprep.subr.mxu0 0.0
        %371 = vmatpush1.msra.mxu0 0.0
        %372 = vmatprep.subr.mxu0 0.0
        %373 = vmatpush1.msra.mxu0 0.0
        %374 = vmatprep.subr.mxu0 0.0
        %375 = vmatpush1.msra.mxu0 0.0
        %376 = vmatprep.subr.mxu0 0.0
        %377 = vmatpush1.msra.mxu0 0.0
        %378 = vmatprep.subr.mxu0 0.0
        %379 = vmatpush1.msra.mxu0 0.0
        %380 = vmatprep.subr.mxu0 0.0
        %381 = vmatpush1.msra.mxu0 0.0
        %382 = vmatprep.mubr.f32.mxu0 0.0
        %383 = vmatmul.mubr.f32.gmra.mrb[0].mxu0 %v271
        %v384 = vpop.f32.mrb[0].mxu0
        %v385 = vadd.f32 %v268, %v384
        %v386 = vpop.f32.mrb[0].mxu0
        %387 = vmatprep.mubr.f32.mxu0 0.0
        %388 = vmatmul.mubr.f32.gmra.mrb[0].mxu0 %v274
        %v389 = vpop.f32.mrb[0].mxu0
        %v390 = vadd.f32 %v268, %v389
        %v391 = vpop.f32.mrb[0].mxu0
        %392 = vmatprep.mubr.f32.mxu0 0.0
        %393 = vmatmul.mubr.f32.gmra.mrb[0].mxu0 %v277
        %v394 = vpop.f32.mrb[0].mxu0
        %v395 = vadd.f32 %v268, %v394
        %v396 = vpop.f32.mrb[0].mxu0
        %397 = vmatprep.mubr.f32.mxu0 0.0
        %398 = vmatmul.mubr.f32.gmra.mrb[0].mxu0 %v280
        %v399 = vpop.f32.mrb[0].mxu0
        %v400 = vadd.f32 %v268, %v399
        %v401 = vpop.f32.mrb[0].mxu0
        %402 = vmatprep.mubr.f32.mxu0 0.0
        %403 = vmatmul.mubr.f32.gmra.mrb[0].mxu0 %v283
        %v404 = vpop.f32.mrb[0].mxu0
        %v405 = vadd.f32 %v268, %v404
        %v406 = vpop.f32.mrb[0].mxu0
        %407 = vmatprep.mubr.f32.mxu0 0.0
        %408 = vmatmul.mubr.f32.gmra.mrb[0].mxu0 %v286
        %v409 = vpop.f32.mrb[0].mxu0
        %v410 = vadd.f32 %v268, %v409
        %v411 = vpop.f32.mrb[0].mxu0
        %412 = vmatprep.mubr.f32.mxu0 0.0
        %413 = vmatmul.mubr.f32.gmra.mrb[0].mxu0 %v289
        %v414 = vpop.f32.mrb[0].mxu0
        %v415 = vadd.f32 %v268, %v414
        %v416 = vpop.f32.mrb[0].mxu0
        %417 = vmatprep.mubr.f32.mxu0 0.0
        %418 = vmatmul.mubr.f32.gmra.mrb[0].mxu0 %v292
        %v419 = vpop.f32.mrb[0].mxu0
        %v420 = vadd.f32 %v268, %v419
        %v421 = vpop.f32.mrb[0].mxu0
        %422 = vmatprep.mubr.f32.mxu0 0.0
        %423 = vmatmul.mubr.f32.gmra.mrb[0].mxu0 %v295
        %v424 = vpop.f32.mrb[0].mxu0
        %v425 = vadd.f32 %v268, %v424
        %v426 = vpop.f32.mrb[0].mxu0
        %427 = vmatprep.mubr.f32.mxu0 0.0
        %428 = vmatmul.mubr.f32.gmra.mrb[0].mxu0 %v298
        %v429 = vpop.f32.mrb[0].mxu0
        %v430 = vadd.f32 %v268, %v429
        %v431 = vpop.f32.mrb[0].mxu0
        %432 = vmatprep.mubr.f32.mxu0 0.0
        %433 = vmatmul.mubr.f32.gmra.mrb[0].mxu0 %v301
        %v434 = vpop.f32.mrb[0].mxu0
        %v435 = vadd.f32 %v268, %v434
        %v436 = vpop.f32.mrb[0].mxu0
        %437 = vmatprep.mubr.f32.mxu0 0.0
        %438 = vmatmul.mubr.f32.gmra.mrb[0].mxu0 %v304
        %v439 = vpop.f32.mrb[0].mxu0
        %v440 = vadd.f32 %v268, %v439
        %v441 = vpop.f32.mrb[0].mxu0
        %442 = vmatprep.mubr.f32.mxu0 0.0
        %443 = vmatmul.mubr.f32.gmra.mrb[0].mxu0 %v307
        %v444 = vpop.f32.mrb[0].mxu0
        %v445 = vadd.f32 %v268, %v444
        %v446 = vpop.f32.mrb[0].mxu0
        %447 = vmatprep.mubr.f32.mxu0 0.0
        %448 = vmatmul.mubr.f32.gmra.mrb[0].mxu0 %v310
        %v449 = vpop.f32.mrb[0].mxu0
        %v450 = vadd.f32 %v268, %v449
        %v451 = vpop.f32.mrb[0].mxu0
        %452 = vmatprep.mubr.f32.mxu0 0.0
        %453 = vmatmul.mubr.f32.gmra.mrb[0].mxu0 %v313
        %v454 = vpop.f32.mrb[0].mxu0
        %v455 = vadd.f32 %v268, %v454
        %v456 = vpop.f32.mrb[0].mxu0
        %457 = vmatprep.mubr.f32.mxu0 0.0
        %458 = vmatmul.mubr.f32.gmra.mrb[0].mxu0 %v316
        %v459 = vpop.f32.mrb[0].mxu0
        %v460 = vadd.f32 %v268, %v459
        %v461 = vpop.f32.mrb[0].mxu0
        %462 = vdwg.mxu0
        %v463 = vmax.f32 %v385, 0.0
        %v464 = vmax.f32 %v390, 0.0
        %v465 = vmax.f32 %v395, 0.0
        %v466 = vmax.f32 %v400, 0.0
        %v467 = vmax.f32 %v405, 0.0
        %v468 = vmax.f32 %v410, 0.0
        %v469 = vmax.f32 %v415, 0.0
        %v470 = vmax.f32 %v420, 0.0
        %v471 = vmax.f32 %v425, 0.0
        %v472 = vmax.f32 %v430, 0.0
        %v473 = vmax.f32 %v435, 0.0
        %v474 = vmax.f32 %v440, 0.0
        %v475 = vmax.f32 %v445, 0.0
        %v476 = vmax.f32 %v450, 0.0
        %v477 = vmax.f32 %v455, 0.0
        %v478 = vmax.f32 %v460, 0.0
        %v479 = vld [vmem:[%s2] sm:$0xff]
        %v480 = vld [vmem:[%s2 + $0x8] sm:$0xff]
        %v481 = vld [vmem:[%s2 + $0x10] sm:$0xff]
        %v482 = vld [vmem:[%s2 + $0x18] sm:$0xff]
        %v483 = vld [vmem:[%s2 + $0x20] sm:$0xff]
        %v484 = vld [vmem:[%s2 + $0x28] sm:$0xff]
        %v485 = vld [vmem:[%s2 + $0x30] sm:$0xff]
        %v486 = vld [vmem:[%s2 + $0x38] sm:$0xff]
        %v487 = vld [vmem:[%s2 + $0x40] sm:$0xff]
        %v488 = vld [vmem:[%s2 + $0x48] sm:$0xff]
        %v489 = vld [vmem:[%s2 + $0x50] sm:$0xff]
        %v490 = vld [vmem:[%s2 + $0x58] sm:$0xff]
        %v491 = vld [vmem:[%s2 + $0x60] sm:$0xff]
        %v492 = vld [vmem:[%s2 + $0x68] sm:$0xff]
        %v493 = vld [vmem:[%s2 + $0x70] sm:$0xff]
        %v494 = vld [vmem:[%s2 + $0x78] sm:$0xff]
        %v495 = vlaneseq
        %v496 = vshrl.u32 %v495, 7
        %v497 = vsub.s32 1, %v496
        %v498 = vrot.slane %v246, %v497
        %499 = vmatprep.subr.mxu0 0.0
        %500 = vmatpush1.msra.mxu0 %v479
        %501 = vmatprep.subr.mxu0 0.0
        %502 = vmatpush1.msra.mxu0 %v480
        %503 = vmatprep.subr.mxu0 0.0
        %504 = vmatpush1.msra.mxu0 %v481
        %505 = vmatprep.subr.mxu0 0.0
        %506 = vmatpush1.msra.mxu0 %v482
        %507 = vmatprep.subr.mxu0 0.0
        %508 = vmatpush1.msra.mxu0 %v483
        %509 = vmatprep.subr.mxu0 0.0
        %510 = vmatpush1.msra.mxu0 %v484
        %511 = vmatprep.subr.mxu0 0.0
        %512 = vmatpush1.msra.mxu0 %v485
        %513 = vmatprep.subr.mxu0 0.0
        %514 = vmatpush1.msra.mxu0 %v486
        %515 = vmatprep.subr.mxu0 0.0
        %516 = vmatpush1.msra.mxu0 %v487
        %517 = vmatprep.subr.mxu0 0.0
        %518 = vmatpush1.msra.mxu0 %v488
        %519 = vmatprep.subr.mxu0 0.0
        %520 = vmatpush1.msra.mxu0 %v489
        %521 = vmatprep.subr.mxu0 0.0
        %522 = vmatpush1.msra.mxu0 %v490
        %523 = vmatprep.subr.mxu0 0.0
        %524 = vmatpush1.msra.mxu0 %v491
        %525 = vmatprep.subr.mxu0 0.0
        %526 = vmatpush1.msra.mxu0 %v492
        %527 = vmatprep.subr.mxu0 0.0
        %528 = vmatpush1.msra.mxu0 %v493
        %529 = vmatprep.subr.mxu0 0.0
        %530 = vmatpush1.msra.mxu0 %v494
        %531 = vmatprep.subr.mxu0 0.0
        %532 = vmatpush1.msra.mxu0 0.0
        %533 = vmatprep.subr.mxu0 0.0
        %534 = vmatpush1.msra.mxu0 0.0
        %535 = vmatprep.subr.mxu0 0.0
        %536 = vmatpush1.msra.mxu0 0.0
        %537 = vmatprep.subr.mxu0 0.0
        %538 = vmatpush1.msra.mxu0 0.0
        %539 = vmatprep.subr.mxu0 0.0
        %540 = vmatpush1.msra.mxu0 0.0
        %541 = vmatprep.subr.mxu0 0.0
        %542 = vmatpush1.msra.mxu0 0.0
        %543 = vmatprep.subr.mxu0 0.0
        %544 = vmatpush1.msra.mxu0 0.0
        %545 = vmatprep.subr.mxu0 0.0
        %546 = vmatpush1.msra.mxu0 0.0
        %547 = vmatprep.subr.mxu0 0.0
        %548 = vmatpush1.msra.mxu0 0.0
        %549 = vmatprep.subr.mxu0 0.0
        %550 = vmatpush1.msra.mxu0 0.0
        %551 = vmatprep.subr.mxu0 0.0
        %552 = vmatpush1.msra.mxu0 0.0
        %553 = vmatprep.subr.mxu0 0.0
        %554 = vmatpush1.msra.mxu0 0.0
        %555 = vmatprep.subr.mxu0 0.0
        %556 = vmatpush1.msra.mxu0 0.0
        %557 = vmatprep.subr.mxu0 0.0
        %558 = vmatpush1.msra.mxu0 0.0
        %559 = vmatprep.subr.mxu0 0.0
        %560 = vmatpush1.msra.mxu0 0.0
        %561 = vmatprep.subr.mxu0 0.0
        %562 = vmatpush1.msra.mxu0 0.0
        %563 = vmatprep.mubr.f32.mxu0 0.0
        %564 = vmatmul.mubr.f32.gmra.mrb[0].mxu0 %v463
        %v565 = vpop.f32.mrb[0].mxu0
        %v566 = vadd.f32 %v498, %v565
        %v567 = vpop.f32.mrb[0].mxu0
        %568 = vmatprep.mubr.f32.mxu0 0.0
        %569 = vmatmul.mubr.f32.gmra.mrb[0].mxu0 %v464
        %v570 = vpop.f32.mrb[0].mxu0
        %v571 = vadd.f32 %v498, %v570
        %v572 = vpop.f32.mrb[0].mxu0
        %573 = vmatprep.mubr.f32.mxu0 0.0
        %574 = vmatmul.mubr.f32.gmra.mrb[0].mxu0 %v465
        %v575 = vpop.f32.mrb[0].mxu0
        %v576 = vadd.f32 %v498, %v575
        %v577 = vpop.f32.mrb[0].mxu0
        %578 = vmatprep.mubr.f32.mxu0 0.0
        %579 = vmatmul.mubr.f32.gmra.mrb[0].mxu0 %v466
        %v580 = vpop.f32.mrb[0].mxu0
        %v581 = vadd.f32 %v498, %v580
        %v582 = vpop.f32.mrb[0].mxu0
        %583 = vmatprep.mubr.f32.mxu0 0.0
        %584 = vmatmul.mubr.f32.gmra.mrb[0].mxu0 %v467
        %v585 = vpop.f32.mrb[0].mxu0
        %v586 = vadd.f32 %v498, %v585
        %v587 = vpop.f32.mrb[0].mxu0
        %588 = vmatprep.mubr.f32.mxu0 0.0
        %589 = vmatmul.mubr.f32.gmra.mrb[0].mxu0 %v468
        %v590 = vpop.f32.mrb[0].mxu0
        %v591 = vadd.f32 %v498, %v590
        %v592 = vpop.f32.mrb[0].mxu0
        %593 = vmatprep.mubr.f32.mxu0 0.0
        %594 = vmatmul.mubr.f32.gmra.mrb[0].mxu0 %v469
        %v595 = vpop.f32.mrb[0].mxu0
        %v596 = vadd.f32 %v498, %v595
        %v597 = vpop.f32.mrb[0].mxu0
        %598 = vmatprep.mubr.f32.mxu0 0.0
        %599 = vmatmul.mubr.f32.gmra.mrb[0].mxu0 %v470
        %v600 = vpop.f32.mrb[0].mxu0
        %v601 = vadd.f32 %v498, %v600
        %v602 = vpop.f32.mrb[0].mxu0
        %603 = vmatprep.mubr.f32.mxu0 0.0
        %604 = vmatmul.mubr.f32.gmra.mrb[0].mxu0 %v471
        %v605 = vpop.f32.mrb[0].mxu0
        %v606 = vadd.f32 %v498, %v605
        %v607 = vpop.f32.mrb[0].mxu0
        %608 = vmatprep.mubr.f32.mxu0 0.0
        %609 = vmatmul.mubr.f32.gmra.mrb[0].mxu0 %v472
        %v610 = vpop.f32.mrb[0].mxu0
        %v611 = vadd.f32 %v498, %v610
        %v612 = vpop.f32.mrb[0].mxu0
        %613 = vmatprep.mubr.f32.mxu0 0.0
        %614 = vmatmul.mubr.f32.gmra.mrb[0].mxu0 %v473
        %v615 = vpop.f32.mrb[0].mxu0
        %v616 = vadd.f32 %v498, %v615
        %v617 = vpop.f32.mrb[0].mxu0
        %618 = vmatprep.mubr.f32.mxu0 0.0
        %619 = vmatmul.mubr.f32.gmra.mrb[0].mxu0 %v474
        %v620 = vpop.f32.mrb[0].mxu0
        %v621 = vadd.f32 %v498, %v620
        %v622 = vpop.f32.mrb[0].mxu0
        %623 = vmatprep.mubr.f32.mxu0 0.0
        %624 = vmatmul.mubr.f32.gmra.mrb[0].mxu0 %v475
        %v625 = vpop.f32.mrb[0].mxu0
        %v626 = vadd.f32 %v498, %v625
        %v627 = vpop.f32.mrb[0].mxu0
        %628 = vmatprep.mubr.f32.mxu0 0.0
        %629 = vmatmul.mubr.f32.gmra.mrb[0].mxu0 %v476
        %v630 = vpop.f32.mrb[0].mxu0
        %v631 = vadd.f32 %v498, %v630
        %v632 = vpop.f32.mrb[0].mxu0
        %633 = vmatprep.mubr.f32.mxu0 0.0
        %634 = vmatmul.mubr.f32.gmra.mrb[0].mxu0 %v477
        %v635 = vpop.f32.mrb[0].mxu0
        %v636 = vadd.f32 %v498, %v635
        %v637 = vpop.f32.mrb[0].mxu0
        %638 = vmatprep.mubr.f32.mxu0 0.0
        %639 = vmatmul.mubr.f32.gmra.mrb[0].mxu0 %v478
        %v640 = vpop.f32.mrb[0].mxu0
        %v641 = vadd.f32 %v498, %v640
        %v642 = vpop.f32.mrb[0].mxu0
        %643 = vdwg.mxu0
        %v644 = vmax.f32 %v566, 0.0
        %v645 = vmax.f32 %v571, 0.0
        %v646 = vmax.f32 %v576, 0.0
        %v647 = vmax.f32 %v581, 0.0
        %v648 = vmax.f32 %v586, 0.0
        %v649 = vmax.f32 %v591, 0.0
        %v650 = vmax.f32 %v596, 0.0
        %v651 = vmax.f32 %v601, 0.0
        %v652 = vmax.f32 %v606, 0.0
        %v653 = vmax.f32 %v611, 0.0
        %v654 = vmax.f32 %v616, 0.0
        %v655 = vmax.f32 %v621, 0.0
        %v656 = vmax.f32 %v626, 0.0
        %v657 = vmax.f32 %v631, 0.0
        %v658 = vmax.f32 %v636, 0.0
        %v659 = vmax.f32 %v641, 0.0
        %v660 = vld [vmem:[%s3] sm:$0xff]
        %v661 = vld [vmem:[%s3 + $0x8] sm:$0xff]
        %v662 = vld [vmem:[%s3 + $0x10] sm:$0xff]
        %v663 = vld [vmem:[%s3 + $0x18] sm:$0xff]
        %v664 = vld [vmem:[%s3 + $0x20] sm:$0xff]
        %v665 = vld [vmem:[%s3 + $0x28] sm:$0xff]
        %v666 = vld [vmem:[%s3 + $0x30] sm:$0xff]
        %v667 = vld [vmem:[%s3 + $0x38] sm:$0xff]
        %v668 = vld [vmem:[%s3 + $0x40] sm:$0xff]
        %v669 = vld [vmem:[%s3 + $0x48] sm:$0xff]
        %v670 = vld [vmem:[%s3 + $0x50] sm:$0xff]
        %v671 = vld [vmem:[%s3 + $0x58] sm:$0xff]
        %v672 = vld [vmem:[%s3 + $0x60] sm:$0xff]
        %v673 = vld [vmem:[%s3 + $0x68] sm:$0xff]
        %v674 = vld [vmem:[%s3 + $0x70] sm:$0xff]
        %v675 = vld [vmem:[%s3 + $0x78] sm:$0xff]
        %v676 = vlaneseq
        %v677 = vshrl.u32 %v676, 7
        %v678 = vsub.s32 2, %v677
        %v679 = vrot.slane %v246, %v678
        %680 = vmatprep.subr.mxu0 0.0
        %681 = vmatpush1.msra.mxu0 %v660
        %682 = vmatprep.subr.mxu0 0.0
        %683 = vmatpush1.msra.mxu0 %v661
        %684 = vmatprep.subr.mxu0 0.0
        %685 = vmatpush1.msra.mxu0 %v662
        %686 = vmatprep.subr.mxu0 0.0
        %687 = vmatpush1.msra.mxu0 %v663
        %688 = vmatprep.subr.mxu0 0.0
        %689 = vmatpush1.msra.mxu0 %v664
        %690 = vmatprep.subr.mxu0 0.0
        %691 = vmatpush1.msra.mxu0 %v665
        %692 = vmatprep.subr.mxu0 0.0
        %693 = vmatpush1.msra.mxu0 %v666
        %694 = vmatprep.subr.mxu0 0.0
        %695 = vmatpush1.msra.mxu0 %v667
        %696 = vmatprep.subr.mxu0 0.0
        %697 = vmatpush1.msra.mxu0 %v668
        %698 = vmatprep.subr.mxu0 0.0
        %699 = vmatpush1.msra.mxu0 %v669
        %700 = vmatprep.subr.mxu0 0.0
        %701 = vmatpush1.msra.mxu0 %v670
        %702 = vmatprep.subr.mxu0 0.0
        %703 = vmatpush1.msra.mxu0 %v671
        %704 = vmatprep.subr.mxu0 0.0
        %705 = vmatpush1.msra.mxu0 %v672
        %706 = vmatprep.subr.mxu0 0.0
        %707 = vmatpush1.msra.mxu0 %v673
        %708 = vmatprep.subr.mxu0 0.0
        %709 = vmatpush1.msra.mxu0 %v674
        %710 = vmatprep.subr.mxu0 0.0
        %711 = vmatpush1.msra.mxu0 %v675
        %712 = vmatprep.subr.mxu0 0.0
        %713 = vmatpush1.msra.mxu0 0.0
        %714 = vmatprep.subr.mxu0 0.0
        %715 = vmatpush1.msra.mxu0 0.0
        %716 = vmatprep.subr.mxu0 0.0
        %717 = vmatpush1.msra.mxu0 0.0
        %718 = vmatprep.subr.mxu0 0.0
        %719 = vmatpush1.msra.mxu0 0.0
        %720 = vmatprep.subr.mxu0 0.0
        %721 = vmatpush1.msra.mxu0 0.0
        %722 = vmatprep.subr.mxu0 0.0
        %723 = vmatpush1.msra.mxu0 0.0
        %724 = vmatprep.subr.mxu0 0.0
        %725 = vmatpush1.msra.mxu0 0.0
        %726 = vmatprep.subr.mxu0 0.0
        %727 = vmatpush1.msra.mxu0 0.0
        %728 = vmatprep.subr.mxu0 0.0
        %729 = vmatpush1.msra.mxu0 0.0
        %730 = vmatprep.subr.mxu0 0.0
        %731 = vmatpush1.msra.mxu0 0.0
        %732 = vmatprep.subr.mxu0 0.0
        %733 = vmatpush1.msra.mxu0 0.0
        %734 = vmatprep.subr.mxu0 0.0
        %735 = vmatpush1.msra.mxu0 0.0
        %736 = vmatprep.subr.mxu0 0.0
        %737 = vmatpush1.msra.mxu0 0.0
        %738 = vmatprep.subr.mxu0 0.0
        %739 = vmatpush1.msra.mxu0 0.0
        %740 = vmatprep.subr.mxu0 0.0
        %741 = vmatpush1.msra.mxu0 0.0
        %742 = vmatprep.subr.mxu0 0.0
        %743 = vmatpush1.msra.mxu0 0.0
        %744 = vmatprep.mubr.f32.mxu0 0.0
        %745 = vmatmul.mubr.f32.gmra.mrb[0].mxu0 %v644
        %v746 = vpop.f32.mrb[0].mxu0
        %v747 = vadd.f32 %v679, %v746
        %v748 = vpop.f32.mrb[0].mxu0
        %749 = vmatprep.mubr.f32.mxu0 0.0
        %750 = vmatmul.mubr.f32.gmra.mrb[0].mxu0 %v645
        %v751 = vpop.f32.mrb[0].mxu0
        %v752 = vadd.f32 %v679, %v751
        %v753 = vpop.f32.mrb[0].mxu0
        %754 = vmatprep.mubr.f32.mxu0 0.0
        %755 = vmatmul.mubr.f32.gmra.mrb[0].mxu0 %v646
        %v756 = vpop.f32.mrb[0].mxu0
        %v757 = vadd.f32 %v679, %v756
        %v758 = vpop.f32.mrb[0].mxu0
        %759 = vmatprep.mubr.f32.mxu0 0.0
        %760 = vmatmul.mubr.f32.gmra.mrb[0].mxu0 %v647
        %v761 = vpop.f32.mrb[0].mxu0
        %v762 = vadd.f32 %v679, %v761
        %v763 = vpop.f32.mrb[0].mxu0
        %764 = vmatprep.mubr.f32.mxu0 0.0
        %765 = vmatmul.mubr.f32.gmra.mrb[0].mxu0 %v648
        %v766 = vpop.f32.mrb[0].mxu0
        %v767 = vadd.f32 %v679, %v766
        %v768 = vpop.f32.mrb[0].mxu0
        %769 = vmatprep.mubr.f32.mxu0 0.0
        %770 = vmatmul.mubr.f32.gmra.mrb[0].mxu0 %v649
        %v771 = vpop.f32.mrb[0].mxu0
        %v772 = vadd.f32 %v679, %v771
        %v773 = vpop.f32.mrb[0].mxu0
        %774 = vmatprep.mubr.f32.mxu0 0.0
        %775 = vmatmul.mubr.f32.gmra.mrb[0].mxu0 %v650
        %v776 = vpop.f32.mrb[0].mxu0
        %v777 = vadd.f32 %v679, %v776
        %v778 = vpop.f32.mrb[0].mxu0
        %779 = vmatprep.mubr.f32.mxu0 0.0
        %780 = vmatmul.mubr.f32.gmra.mrb[0].mxu0 %v651
        %v781 = vpop.f32.mrb[0].mxu0
        %v782 = vadd.f32 %v679, %v781
        %v783 = vpop.f32.mrb[0].mxu0
        %784 = vmatprep.mubr.f32.mxu0 0.0
        %785 = vmatmul.mubr.f32.gmra.mrb[0].mxu0 %v652
        %v786 = vpop.f32.mrb[0].mxu0
        %v787 = vadd.f32 %v679, %v786
        %v788 = vpop.f32.mrb[0].mxu0
        %789 = vmatprep.mubr.f32.mxu0 0.0
        %790 = vmatmul.mubr.f32.gmra.mrb[0].mxu0 %v653
        %v791 = vpop.f32.mrb[0].mxu0
        %v792 = vadd.f32 %v679, %v791
        %v793 = vpop.f32.mrb[0].mxu0
        %794 = vmatprep.mubr.f32.mxu0 0.0
        %795 = vmatmul.mubr.f32.gmra.mrb[0].mxu0 %v654
        %v796 = vpop.f32.mrb[0].mxu0
        %v797 = vadd.f32 %v679, %v796
        %v798 = vpop.f32.mrb[0].mxu0
        %799 = vmatprep.mubr.f32.mxu0 0.0
        %800 = vmatmul.mubr.f32.gmra.mrb[0].mxu0 %v655
        %v801 = vpop.f32.mrb[0].mxu0
        %v802 = vadd.f32 %v679, %v801
        %v803 = vpop.f32.mrb[0].mxu0
        %804 = vmatprep.mubr.f32.mxu0 0.0
        %805 = vmatmul.mubr.f32.gmra.mrb[0].mxu0 %v656
        %v806 = vpop.f32.mrb[0].mxu0
        %v807 = vadd.f32 %v679, %v806
        %v808 = vpop.f32.mrb[0].mxu0
        %809 = vmatprep.mubr.f32.mxu0 0.0
        %810 = vmatmul.mubr.f32.gmra.mrb[0].mxu0 %v657
        %v811 = vpop.f32.mrb[0].mxu0
        %v812 = vadd.f32 %v679, %v811
        %v813 = vpop.f32.mrb[0].mxu0
        %814 = vmatprep.mubr.f32.mxu0 0.0
        %815 = vmatmul.mubr.f32.gmra.mrb[0].mxu0 %v658
        %v816 = vpop.f32.mrb[0].mxu0
        %v817 = vadd.f32 %v679, %v816
        %v818 = vpop.f32.mrb[0].mxu0
        %819 = vmatprep.mubr.f32.mxu0 0.0
        %820 = vmatmul.mubr.f32.gmra.mrb[0].mxu0 %v659
        %v821 = vpop.f32.mrb[0].mxu0
        %v822 = vadd.f32 %v679, %v821
        %v823 = vpop.f32.mrb[0].mxu0
        %824 = vdwg.mxu0
        %vm825 = vcmask 64512
        %826 = vst.msk [vmem:[%s226] sm:$0xff] %vm825, %v747
        %827 = vst.msk [vmem:[%s226 + $0x8] sm:$0xff] %vm825, %v752
        %828 = vst.msk [vmem:[%s226 + $0x10] sm:$0xff] %vm825, %v757
        %829 = vst.msk [vmem:[%s226 + $0x18] sm:$0xff] %vm825, %v762
        %830 = vst.msk [vmem:[%s226 + $0x20] sm:$0xff] %vm825, %v767
        %831 = vst.msk [vmem:[%s226 + $0x28] sm:$0xff] %vm825, %v772
        %832 = vst.msk [vmem:[%s226 + $0x30] sm:$0xff] %vm825, %v777
        %833 = vst.msk [vmem:[%s226 + $0x38] sm:$0xff] %vm825, %v782
        %834 = vst.msk [vmem:[%s226 + $0x40] sm:$0xff] %vm825, %v787
        %835 = vst.msk [vmem:[%s226 + $0x48] sm:$0xff] %vm825, %v792
        %836 = vst.msk [vmem:[%s226 + $0x50] sm:$0xff] %vm825, %v797
        %837 = vst.msk [vmem:[%s226 + $0x58] sm:$0xff] %vm825, %v802
        %838 = vst.msk [vmem:[%s226 + $0x60] sm:$0xff] %vm825, %v807
        %839 = vst.msk [vmem:[%s226 + $0x68] sm:$0xff] %vm825, %v812
        %840 = vst.msk [vmem:[%s226 + $0x70] sm:$0xff] %vm825, %v817
        %841 = vst.msk [vmem:[%s226 + $0x78] sm:$0xff] %vm825, %v822
        %s842 = sand.u32 %s134, 1
        %s843 = sand.u32 %s134, 1
        %s844 = smul.addr %s843, 128
        %s845 = scalar_lea.vmem [#allocation2], %s844
        // Predicated region
        $region41: #{dqn_forward.1} parent=39 // pred_check
          %p846 = pneg %p144
        $region42: #{dqn_forward.1} parent=39 // pred_check_branch
          %848 = sbr.rel (%p846) target = $region44
        $region43: #{dqn_forward.1} parent=39 // pred_region
          %s849 = smul.u32 16, %s16
          %s850 = ssub.s32 25, %s849
          %p851 = scmp.lt.s32.totalorder %s850, 16
          %s852 = scalar_select %p851, %s850, 16
          %s853 = smul.u32 128, %s852
          %p854 = scmp.ne.s32.totalorder 0, %s853
          %s855 = smul.addr %s849, 8
          %s856 = scalar_lea.vmem %s5, %s855
          // Predicated region
          $region45: #{dqn_forward.1} parent=43 // pred_check
            %p857 = pneg %p854
          $region46: #{dqn_forward.1} parent=43 // pred_check_branch
            %859 = sbr.rel (%p857) target = $region48
          $region47: #{dqn_forward.1} parent=43 // pred_region
            // Predicated region
            $region49: #{dqn_forward.1} parent=47 // pred_check
              _
            $region50: #{dqn_forward.1} parent=47 // pred_check_branch
              %861 = sbr.rel (0) target = $region52
            $region51: #{dqn_forward.1} parent=47 // pred_region
              // Predicated region
              $region71: #{dqn_forward.1} parent=51 // pred_check
                _
              $region72: #{dqn_forward.1} parent=51 // pred_check_branch
                %940 = sbr.rel (0) target = $region74
              $region73: #{dqn_forward.1} parent=51 // pred_region
                %s941 = sshrl.u32 %s852, 4
                // While loop
                $region75: #{dqn_forward.1} parent=73 // loop_pre_header
                  _
                $region76: #{dqn_forward.1} parent=73 // loop_header
                  %s943 = sphi 0, %s945
                  %p944 = scmp.ge.s32.totalorder %s943, %s941
                  %s948 = sphi 0, %s985
                  %s949 = sphi %s845, %s988
                  %s950 = sphi %s856, %s989
                $region77: #{dqn_forward.1} parent=73 // loop_header_branch
                  %947 = sbr.rel (%p944) target = $region81
                $region78: #{dqn_forward.1} parent=73 // loop_body
                  %v951 = vld [vmem:[%s949] sm:$0xff]
                  %952 = vst [vmem:[%s950] sm:$0xff] %v951
                  %v953 = vld [vmem:[%s949 + $0x8] sm:$0xff]
                  %954 = vst [vmem:[%s950 + $0x8] sm:$0xff] %v953
                  %v955 = vld [vmem:[%s949 + $0x10] sm:$0xff]
                  %956 = vst [vmem:[%s950 + $0x10] sm:$0xff] %v955
                  %v957 = vld [vmem:[%s949 + $0x18] sm:$0xff]
                  %958 = vst [vmem:[%s950 + $0x18] sm:$0xff] %v957
                  %v959 = vld [vmem:[%s949 + $0x20] sm:$0xff]
                  %960 = vst [vmem:[%s950 + $0x20] sm:$0xff] %v959
                  %v961 = vld [vmem:[%s949 + $0x28] sm:$0xff]
                  %962 = vst [vmem:[%s950 + $0x28] sm:$0xff] %v961
                  %v963 = vld [vmem:[%s949 + $0x30] sm:$0xff]
                  %964 = vst [vmem:[%s950 + $0x30] sm:$0xff] %v963
                  %v965 = vld [vmem:[%s949 + $0x38] sm:$0xff]
                  %966 = vst [vmem:[%s950 + $0x38] sm:$0xff] %v965
                  %v967 = vld [vmem:[%s949 + $0x40] sm:$0xff]
                  %968 = vst [vmem:[%s950 + $0x40] sm:$0xff] %v967
                  %v969 = vld [vmem:[%s949 + $0x48] sm:$0xff]
                  %970 = vst [vmem:[%s950 + $0x48] sm:$0xff] %v969
                  %v971 = vld [vmem:[%s949 + $0x50] sm:$0xff]
                  %972 = vst [vmem:[%s950 + $0x50] sm:$0xff] %v971
                  %v973 = vld [vmem:[%s949 + $0x58] sm:$0xff]
                  %974 = vst [vmem:[%s950 + $0x58] sm:$0xff] %v973
                  %v975 = vld [vmem:[%s949 + $0x60] sm:$0xff]
                  %976 = vst [vmem:[%s950 + $0x60] sm:$0xff] %v975
                  %v977 = vld [vmem:[%s949 + $0x68] sm:$0xff]
                  %978 = vst [vmem:[%s950 + $0x68] sm:$0xff] %v977
                  %v979 = vld [vmem:[%s949 + $0x70] sm:$0xff]
                  %980 = vst [vmem:[%s950 + $0x70] sm:$0xff] %v979
                  %v981 = vld [vmem:[%s949 + $0x78] sm:$0xff]
                  %982 = vst [vmem:[%s950 + $0x78] sm:$0xff] %v981
                  %s983 = sadd.s32 1, %s948
                  %p984 = scmp.ge.s32.totalorder %s983, %s941
                  %s985 = scalar_select %p984, 0, %s983
                  %s986 = smul.u32 %s985, 128
                  %s987 = smul.u32 %s985, 128
                  %s988 = scalar_lea.vmem %s845, %s986 [#allocation2]
                  %s989 = scalar_lea.vmem %s856, %s987
                $region79: #{dqn_forward.1} parent=73 // loop_footer
                  %s945 = sadd.s32 %s943, 1
                $region80: #{dqn_forward.1} parent=73 // loop_footer_branch
                  %942 = sbr.rel target = $region76
                $region81: #{dqn_forward.1} parent=73 // loop_exit
                  _
                %s990 = sshrl.u32 %s852, 4
                %s991 = sand.u32 %s852, 15
                %s992 = smul.u32 %s990, 16
                %s993 = smul.u32 8, %s992
                %s994 = scalar_lea.vmem %s845, %s993 [#allocation2]
                %s995 = smul.u32 8, %s992
                %s996 = scalar_lea.vmem %s856, %s995
                // While loop
                $region82: #{dqn_forward.1} parent=73 // loop_pre_header
                  _
                $region83: #{dqn_forward.1} parent=73 // loop_header
                  %s998 = sphi 0, %s1000
                  %p999 = scmp.ge.s32.totalorder %s998, %s991
                  %s1003 = sphi 0, %s1010
                  %s1004 = sphi %s994, %s1013
                  %s1005 = sphi %s996, %s1014
                $region84: #{dqn_forward.1} parent=73 // loop_header_branch
                  %1002 = sbr.rel (%p999) target = $region88
                $region85: #{dqn_forward.1} parent=73 // loop_body
                  %v1006 = vld [vmem:[%s1004] sm:$0xff]
                  %1007 = vst [vmem:[%s1005] sm:$0xff] %v1006
                  %s1008 = sadd.s32 1, %s1003
                  %p1009 = scmp.ge.s32.totalorder %s1008, %s991
                  %s1010 = scalar_select %p1009, 0, %s1008
                  %s1011 = smul.u32 %s1010, 8
                  %s1012 = smul.u32 %s1010, 8
                  %s1013 = scalar_lea.vmem %s994, %s1011 [#allocation2]
                  %s1014 = scalar_lea.vmem %s996, %s1012
                $region86: #{dqn_forward.1} parent=73 // loop_footer
                  %s1000 = sadd.s32 %s998, 1
                $region87: #{dqn_forward.1} parent=73 // loop_footer_branch
                  %997 = sbr.rel target = $region83
                $region88: #{dqn_forward.1} parent=73 // loop_exit
                  _
              $region74: #{dqn_forward.1} parent=51 // pred_fallthru
                _
              // Predicated region
              $region89: #{dqn_forward.1} parent=51 // pred_check
                _
              $region90: #{dqn_forward.1} parent=51 // pred_check_branch
                %1016 = sbr.rel target = $region92
              $region91: #{dqn_forward.1} parent=51 // pred_region
                _
              $region92: #{dqn_forward.1} parent=51 // pred_fallthru
                _
            $region52: #{dqn_forward.1} parent=47 // pred_fallthru
              _
            // Predicated region
            $region53: #{dqn_forward.1} parent=47 // pred_check
              _
            $region54: #{dqn_forward.1} parent=47 // pred_check_branch
              %863 = sbr.rel target = $region56
            $region55: #{dqn_forward.1} parent=47 // pred_region
              %s865 = sshrl.u32 %s852, 4
              // While loop
              $region57: #{dqn_forward.1} parent=55 // loop_pre_header
                _
              $region58: #{dqn_forward.1} parent=55 // loop_header
                %s867 = sphi 0, %s869
                %p868 = scmp.ge.s32.totalorder %s867, %s865
                %s872 = sphi 0, %s909
                %s873 = sphi %s845, %s912
                %s874 = sphi %s856, %s913
              $region59: #{dqn_forward.1} parent=55 // loop_header_branch
                %871 = sbr.rel (%p868) target = $region63
              $region60: #{dqn_forward.1} parent=55 // loop_body
                %v875 = vld [vmem:[%s873] sm:$0xff]
                %876 = vst [vmem:[%s874] sm:$0xff] %v875
                %v877 = vld [vmem:[%s873 + $0x8] sm:$0xff]
                %878 = vst [vmem:[%s874 + $0x8] sm:$0xff] %v877
                %v879 = vld [vmem:[%s873 + $0x10] sm:$0xff]
                %880 = vst [vmem:[%s874 + $0x10] sm:$0xff] %v879
                %v881 = vld [vmem:[%s873 + $0x18] sm:$0xff]
                %882 = vst [vmem:[%s874 + $0x18] sm:$0xff] %v881
                %v883 = vld [vmem:[%s873 + $0x20] sm:$0xff]
                %884 = vst [vmem:[%s874 + $0x20] sm:$0xff] %v883
                %v885 = vld [vmem:[%s873 + $0x28] sm:$0xff]
                %886 = vst [vmem:[%s874 + $0x28] sm:$0xff] %v885
                %v887 = vld [vmem:[%s873 + $0x30] sm:$0xff]
                %888 = vst [vmem:[%s874 + $0x30] sm:$0xff] %v887
                %v889 = vld [vmem:[%s873 + $0x38] sm:$0xff]
                %890 = vst [vmem:[%s874 + $0x38] sm:$0xff] %v889
                %v891 = vld [vmem:[%s873 + $0x40] sm:$0xff]
                %892 = vst [vmem:[%s874 + $0x40] sm:$0xff] %v891
                %v893 = vld [vmem:[%s873 + $0x48] sm:$0xff]
                %894 = vst [vmem:[%s874 + $0x48] sm:$0xff] %v893
                %v895 = vld [vmem:[%s873 + $0x50] sm:$0xff]
                %896 = vst [vmem:[%s874 + $0x50] sm:$0xff] %v895
                %v897 = vld [vmem:[%s873 + $0x58] sm:$0xff]
                %898 = vst [vmem:[%s874 + $0x58] sm:$0xff] %v897
                %v899 = vld [vmem:[%s873 + $0x60] sm:$0xff]
                %900 = vst [vmem:[%s874 + $0x60] sm:$0xff] %v899
                %v901 = vld [vmem:[%s873 + $0x68] sm:$0xff]
                %902 = vst [vmem:[%s874 + $0x68] sm:$0xff] %v901
                %v903 = vld [vmem:[%s873 + $0x70] sm:$0xff]
                %904 = vst [vmem:[%s874 + $0x70] sm:$0xff] %v903
                %v905 = vld [vmem:[%s873 + $0x78] sm:$0xff]
                %906 = vst [vmem:[%s874 + $0x78] sm:$0xff] %v905
                %s907 = sadd.s32 1, %s872
                %p908 = scmp.ge.s32.totalorder %s907, %s865
                %s909 = scalar_select %p908, 0, %s907
                %s910 = smul.u32 %s909, 128
                %s911 = smul.u32 %s909, 128
                %s912 = scalar_lea.vmem %s845, %s910 [#allocation2]
                %s913 = scalar_lea.vmem %s856, %s911
              $region61: #{dqn_forward.1} parent=55 // loop_footer
                %s869 = sadd.s32 %s867, 1
              $region62: #{dqn_forward.1} parent=55 // loop_footer_branch
                %866 = sbr.rel target = $region58
              $region63: #{dqn_forward.1} parent=55 // loop_exit
                _
              %s914 = sshrl.u32 %s852, 4
              %s915 = sand.u32 %s852, 15
              %s916 = smul.u32 %s914, 16
              %s917 = smul.u32 8, %s916
              %s918 = scalar_lea.vmem %s845, %s917 [#allocation2]
              %s919 = smul.u32 8, %s916
              %s920 = scalar_lea.vmem %s856, %s919
              // While loop
              $region64: #{dqn_forward.1} parent=55 // loop_pre_header
                _
              $region65: #{dqn_forward.1} parent=55 // loop_header
                %s922 = sphi 0, %s924
                %p923 = scmp.ge.s32.totalorder %s922, %s915
                %s927 = sphi 0, %s934
                %s928 = sphi %s918, %s937
                %s929 = sphi %s920, %s938
              $region66: #{dqn_forward.1} parent=55 // loop_header_branch
                %926 = sbr.rel (%p923) target = $region70
              $region67: #{dqn_forward.1} parent=55 // loop_body
                %v930 = vld [vmem:[%s928] sm:$0xff]
                %931 = vst [vmem:[%s929] sm:$0xff] %v930
                %s932 = sadd.s32 1, %s927
                %p933 = scmp.ge.s32.totalorder %s932, %s915
                %s934 = scalar_select %p933, 0, %s932
                %s935 = smul.u32 %s934, 8
                %s936 = smul.u32 %s934, 8
                %s937 = scalar_lea.vmem %s918, %s935 [#allocation2]
                %s938 = scalar_lea.vmem %s920, %s936
              $region68: #{dqn_forward.1} parent=55 // loop_footer
                %s924 = sadd.s32 %s922, 1
              $region69: #{dqn_forward.1} parent=55 // loop_footer_branch
                %921 = sbr.rel target = $region65
              $region70: #{dqn_forward.1} parent=55 // loop_exit
                _
            $region56: #{dqn_forward.1} parent=47 // pred_fallthru
              _
          $region48: #{dqn_forward.1} parent=43 // pred_fallthru
            _
          %1017 = vnop
        $region44: #{dqn_forward.1} parent=39 // pred_fallthru
          _
      $region40: #{dqn_forward.1} parent=5 // pred_fallthru
        _
      %p1018 = scmp.le.s32.totalorder 2, %s11
      // Predicated region
      $region93: #{dqn_forward.1} parent=5 // pred_check
        %p1019 = pneg %p1018
      $region94: #{dqn_forward.1} parent=5 // pred_check_branch
        %1021 = sbr.rel (%p1019) target = $region96
      $region95: #{dqn_forward.1} parent=5 // pred_region
        %s1022 = ssub.s32 %s11, 2
        // Predicated region
        $region97: #{dqn_forward.1} parent=95 // pred_check
          %p1023 = pneg %p150
        $region98: #{dqn_forward.1} parent=95 // pred_check_branch
          %1025 = sbr.rel (%p1023) target = $region100
        $region99: #{dqn_forward.1} parent=95 // pred_region
          %s1026 = sand.u32 %s135, 1
          %s1027 = sand.u32 %s135, 1
          %s1028 = smul.addr %s1027, 128
          %s1029 = scalar_lea.vmem [#allocation2], %s1028
        $region100: #{dqn_forward.1} parent=95 // pred_fallthru
          _
      $region96: #{dqn_forward.1} parent=5 // pred_fallthru
        _
    $region6: #{dqn_forward.1} parent=1 // loop_footer
      %s15 = sadd.s32 1, %s11
    $region7: #{dqn_forward.1} parent=1 // loop_footer_branch
      %10 = sbr.rel target = $region3
    $region8: #{dqn_forward.1} parent=1 // loop_exit
      _

</llo_original>
